<compile_context>
chip_gen: v6e
topology: v6e:2x2x1
jax: 0.10.0
libtpu: 0.0.40
codegen_flags: <defaults>
</compile_context>

<pallas_src>
import math

import jax
import jax.numpy as jnp
from jax.experimental import pallas as pl
from jax.experimental.pallas import tpu as pltpu

LOWER_BOUND = 0.001
ALPHA = -1.0 * math.log(1.0 / LOWER_BOUND - 1.0)  # == -log(999) ≈ -6.9068

_LANES = (512, 256, 128)          # lane-dense widths (multiples of 128)
_TARGET_BLOCK_BYTES = 4 << 20     # ~4 MiB per block buffer (per perf review)
_SMALL_FALLBACK_ELEMS = 1 << 18   # below ~1 MiB (f32): plain XLA elementwise wins
_VMEM_LIMIT_BYTES = 32 << 20      # 16 MiB double-buffered in+out fits with headroom


def _modified_sigmoid_kernel(x_ref, o_ref):
    # Elementwise hot path: shifted sigmoid. Math in f32 (exact ALPHA, full
    # precision EUP exp), cast back on store. Masked ragged-block tails may
    # feed stale data through exp; those lanes are never written (masked vst).
    z = x_ref[...].astype(jnp.float32) + jnp.float32(ALPHA)
    o_ref[...] = jax.nn.sigmoid(z).astype(o_ref.dtype)


def _choose_row_tile(rows: int, lane: int, itemsize: int) -> int:
    """Row tile: ~4 MiB blocks, >=2 grid steps when the tensor is big enough."""
    tr = max(32, (_TARGET_BLOCK_BYTES // (lane * itemsize)) // 32 * 32)
    if rows > 64:
        # Cap at ~half the rows (rounded to a sublane-pack-friendly multiple
        # of 32) so dimension_semantics=("parallel",) can shard across v7x's
        # two TensorCores instead of collapsing to grid=(1,).
        half = ((rows + 1) // 2 + 31) // 32 * 32
        tr = min(tr, half)
    if tr >= rows:
        return rows  # single full-extent block (always legal)
    return tr


def modified_sigmoid(x: jax.Array, *, small_fallback: bool = True) -> jax.Array:
    """Apply sigmoid(x + alpha) elementwise via a Pallas TPU kernel."""
    orig_shape = x.shape
    orig_dtype = x.dtype
    total = int(x.size)

    if total == 0:
        return x
    if small_fallback and total < _SMALL_FALLBACK_ELEMS:
        # Launch + layout plumbing would dwarf the work; let XLA fuse it.
        return jax.nn.sigmoid(x + ALPHA)

    flat = x.reshape(-1)

    # Lane-dense layout with zero-copy reshape whenever the element count is a
    # multiple of 128/256/512. Otherwise pad by < LANE elements (uncommon).
    lane = next((l for l in _LANES if total % l == 0), None)
    padded_total = total
    if lane is None:
        lane = _LANES[0]
        padded_total = ((total + lane - 1) // lane) * lane
        flat = jnp.pad(flat, (0, padded_total - total))

    rows = padded_total // lane
    itemsize = x.dtype.itemsize
    tr = _choose_row_tile(rows, lane, itemsize)
    grid = (pl.cdiv(rows, tr),)  # ragged final block is masked by Pallas

    x2d = flat.reshape(rows, lane)
    elems = rows * lane

    out2d = pl.pallas_call(
        _modified_sigmoid_kernel,
        out_shape=jax.ShapeDtypeStruct((rows, lane), orig_dtype),
        grid=grid,
        in_specs=[pl.BlockSpec((tr, lane), lambda i: (i, 0))],
        out_specs=pl.BlockSpec((tr, lane), lambda i: (i, 0)),
        compiler_params=pltpu.CompilerParams(
            dimension_semantics=("parallel",),
            vmem_limit_bytes=_VMEM_LIMIT_BYTES,
        ),
        cost_estimate=pl.CostEstimate(
            flops=4 * elems,                           # add + sigmoid VPU work
            transcendentals=elems,                     # one exp per element
            bytes_accessed=2 * elems * itemsize,       # read + write (padded)
        ),
    )(x2d)

    out_flat = out2d.reshape(-1)
    if padded_total != total:
        out_flat = out_flat[:total]
    return out_flat.reshape(orig_shape)


if __name__ == "__main__":
    key = jax.random.PRNGKey(0)
    k1, k2, k3 = jax.random.split(key, 3)

    # Primary spec-sized test (NCHW: batch=2, channels=4, 16x16 spatial).
    # Force the Pallas path (the small-tensor fallback would otherwise run).
    x = jax.random.normal(k1, (2, 4, 16, 16), dtype=jnp.float32)
    y = modified_sigmoid(x, small_fallback=False)
    jax.block_until_ready(y)
    y_ref = jax.nn.sigmoid(x + ALPHA)
    assert y.shape == x.shape and y.dtype == x.dtype
    assert jnp.allclose(y, y_ref, atol=1e-6, rtol=1e-6), "mismatch (primary)"

    # LANE-aligned, multi-block path (grid has >= 2 parallel steps).
    x2 = jax.random.normal(k2, (2, 8, 64, 64), dtype=jnp.float32)
    y2 = modified_sigmoid(x2, small_fallback=False)
    jax.block_until_ready(y2)
    assert jnp.allclose(y2, jax.nn.sigmoid(x2 + ALPHA), atol=1e-6, rtol=1e-6), \
        "mismatch (aligned multi-block)"

    # Non-128-multiple element count (bounded pad path) and the default
    # small-tensor XLA fallback path.
    x3 = jax.random.normal(k3, (3, 5, 7, 11), dtype=jnp.float32)
    y3 = modified_sigmoid(x3, small_fallback=False)
    y3_fb = modified_sigmoid(x3)
    jax.block_until_ready((y3, y3_fb))
    y3_ref = jax.nn.sigmoid(x3 + ALPHA)
    assert jnp.allclose(y3, y3_ref, atol=1e-6, rtol=1e-6), "mismatch (ragged)"
    assert jnp.allclose(y3_fb, y3_ref, atol=1e-6, rtol=1e-6), "mismatch (fallback)"

    print("KERNEL_OK")
</pallas_src>

<mosaic_0001>
module attributes {stable_mosaic.version = 11 : i64} {
  func.func @_modified_sigmoid_kernel(%arg0: i32, %arg1: memref<4x512xf32, #tpu.memory_space<vmem>>, %arg2: memref<4x512xf32, #tpu.memory_space<vmem>>) attributes {dimension_semantics = [#tpu.dimension_semantics<parallel>], iteration_bounds = array<i64: 1>, scalar_prefetch = 0 : i64, scratch_operands = 0 : i64, tpu.core_type = #tpu.core_type<tc>, window_params = [{transform_indices = @transform_0, window_bounds = array<i64: 4, 512>}, {transform_indices = @transform_1, window_bounds = array<i64: 4, 512>}]} {
    %c0 = arith.constant 0 : index
    %c0_0 = arith.constant 0 : index
    %0 = vector.load %arg1[%c0, %c0_0] : memref<4x512xf32, #tpu.memory_space<vmem>>, vector<4x512xf32>
    %cst = arith.constant -6.90675497 : f32
    %1 = vector.broadcast %cst : f32 to vector<4x512xf32>
    %2 = arith.addf %0, %1 : vector<4x512xf32>
    %3 = arith.negf %2 : vector<4x512xf32>
    %4 = math.exp %3 : vector<4x512xf32>
    %cst_1 = arith.constant 1.000000e+00 : f32
    %5 = vector.broadcast %cst_1 : f32 to vector<4x512xf32>
    %6 = arith.addf %5, %4 : vector<4x512xf32>
    %7 = arith.divf %5, %6 : vector<4x512xf32>
    %c0_2 = arith.constant 0 : index
    %c0_3 = arith.constant 0 : index
    %8 = vector.load %arg2[%c0_2, %c0_3] : memref<4x512xf32, #tpu.memory_space<vmem>>, vector<4x512xf32>
    tpu.vector_store %arg2[%c0_2, %c0_3], %7 {strides = array<i32>} : memref<4x512xf32, #tpu.memory_space<vmem>>, vector<4x512xf32>,
    return
  }
  func.func @transform_0(%arg0: i32) -> (i32, i32) {
    %c0_i32 = arith.constant 0 : i32
    %c0_i32_0 = arith.constant 0 : i32
    return %arg0, %c0_i32 : i32, i32
  }
  func.func @transform_1(%arg0: i32) -> (i32, i32) {
    %c0_i32 = arith.constant 0 : i32
    %c0_i32_0 = arith.constant 0 : i32
    return %arg0, %c0_i32 : i32, i32
  }
}

</mosaic_0001>

<llo_original>
// kernel: tpu_custom_call.1
$region0: #{tpu_custom_call.1}
  #allocation0 [shape = 'u32[]', space=smem, size = 0x4, offset = 0x4, fixed_abs, tag = 'smem constant byte address 0x4 - core index']
  #allocation1 [shape = 'u32[144,128]{1,0:T(1,128)}', space=vmem, size = 0x12000, scoped, tag = 'internal scratch']
  %s0 = inlined_call_operand.hbm [shape: f32[4,512], index: 0, kind: input, shape index: {}]
  %s1 = inlined_call_operand.hbm [shape: f32[4,512], index: 1, kind: output, shape index: {}]
  %s2 = sld [smem:[#allocation0]]
  $region18: #{tpu_custom_call.1} parent=0
    _
  %s4 = ssub.s32 1, %s2
  %s5 = scalar_select 0, %s4, %s2
  $region1: #{tpu_custom_call.1} parent=0
    #allocation2 [shape = 'u8[8192]{0}', space=vmem, size = 0x2000, scoped, tag = 'input window, operand 0, single buffered']
    #allocation3 [shape = 's32[1]{0}', space=sflag, size = 0x4, scoped, tag = 'scoped memory for tpu_custom_call.1']
    #allocation4 [shape = 's32[1]{0}', space=sflag, size = 0x4, scoped, tag = 'scoped memory for tpu_custom_call.1']
    #allocation5 [shape = 'u8[8192]{0}', space=vmem, size = 0x2000, scoped, tag = 'output window, operand 0, single buffered']
    %6 = vsyncpa [#allocation3], 0
    %7 = vsyncpa [#allocation4], 0
    // Predicated region
    $region2: #{tpu_custom_call.1} parent=1 // pred_check
      _
    $region3: #{tpu_custom_call.1} parent=1 // pred_check_branch
      %9 = sbr.rel (0) target = $region5
    $region4: #{tpu_custom_call.1} parent=1 // pred_region
      %s11 = ssub.s32 256, 256
      %12 = vsyncadd [#allocation3], %s11
      %s14 = sshll.u32 [#allocation2], 4
      %s15 = int_to_ptr.vmem [resolvable:$true] %s14
      %17 = dma.hbm_to_vmem [thread:$0]  %s0, 256, %s15, [#allocation3]
    $region5: #{tpu_custom_call.1} parent=1 // pred_fallthru
      _
    // Predicated region
    $region6: #{tpu_custom_call.1} parent=1 // pred_check
      _
    $region7: #{tpu_custom_call.1} parent=1 // pred_check_branch
      %19 = sbr.rel (0) target = $region9
    $region8: #{tpu_custom_call.1} parent=1 // pred_region
      %20 = dma.done [#allocation3], 256
    $region9: #{tpu_custom_call.1} parent=1 // pred_fallthru
      _
    %v21 = vld [vmem:[#allocation2] sm:$0xff]
    %v22 = vld [vmem:[#allocation2 + $0x8] sm:$0xff]
    %v23 = vadd.f32 %v21, -6.906755
    %v24 = vadd.f32 %v22, -6.906755
    %v25 = vxor.u32 %v23, 2147483648
    %v26 = vxor.u32 %v24, 2147483648
    %v27 = vmul.f32 %v25, 1.442695
    %v28 = vpow.pop %v27
    %v29 = vmul.f32 %v26, 1.442695
    %v30 = vpow.pop %v29
    %v31 = vadd.f32 %v28, 1.0
    %v32 = vadd.f32 %v30, 1.0
    %v33 = vrcp.pop %v31
    %v34 = vmul.f32 1.0, %v33
    %v35 = vrcp.pop %v32
    %v36 = vmul.f32 1.0, %v35
    %37 = vst [vmem:[#allocation5] sm:$0xff] %v34
    %38 = vst [vmem:[#allocation5 + $0x8] sm:$0xff] %v36
    // Predicated region
    $region10: #{tpu_custom_call.1} parent=1 // pred_check
      _
    $region11: #{tpu_custom_call.1} parent=1 // pred_check_branch
      %40 = sbr.rel (0) target = $region13
    $region12: #{tpu_custom_call.1} parent=1 // pred_region
      %s42 = ssub.s32 256, 256
      %43 = vsyncadd [#allocation4], %s42
      %s45 = sshll.u32 [#allocation5], 4
      %s46 = int_to_ptr.vmem [resolvable:$true] %s45
      %48 = dma.vmem_to_hbm [thread:$0]  %s46, 256, %s1, [#allocation4]
    $region13: #{tpu_custom_call.1} parent=1 // pred_fallthru
      _
    // Predicated region
    $region14: #{tpu_custom_call.1} parent=1 // pred_check
      _
    $region15: #{tpu_custom_call.1} parent=1 // pred_check_branch
      %50 = sbr.rel (0) target = $region17
    $region16: #{tpu_custom_call.1} parent=1 // pred_region
      %51 = dma.done [#allocation4], 256
    $region17: #{tpu_custom_call.1} parent=1 // pred_fallthru
      _
    %52 = vsyncpa [#allocation3], 1
    %53 = vsyncpa [#allocation4], 1

</llo_original>
